<compile_context>
chip_gen: v5e
topology: v5e:2x2
jax: 0.10.0
libtpu: 0.0.40
codegen_flags: <defaults>
</compile_context>

<pallas_src>
import functools

import jax
import jax.numpy as jnp
from jax.experimental import pallas as pl
from jax.experimental.pallas import tpu as pltpu

_LANE = 128   # TPU lane width
_TN = 256     # output-label tile (lane-aligned); 1024 padded labels -> 4 tiles


def _round_up(x, m):
    return (x + m - 1) // m * m


def _linear_kernel(x_ref, w_ref, b_ref, o_ref):
    # x_ref: (B, dim) f32 (resident across grid steps)
    # w_ref: (dim, TN) bf16 (streamed weight tile)
    # b_ref: (1, TN)  f32
    # o_ref: (B, TN)  f32
    acc = jnp.dot(
        x_ref[...].astype(jnp.bfloat16),
        w_ref[...],
        preferred_element_type=jnp.float32,
    )
    o_ref[...] = (acc + b_ref[...]).astype(o_ref.dtype)


def prepare_params(weight, bias, compute_dtype=jnp.bfloat16, tile_n=_TN):
    """One-time parameter prep (call at load time, NOT per forward).

    - transpose PyTorch's (num_labels, dim) weight to (dim, num_labels)
    - cast the weight to bf16 (f32 accumulation happens on the MXU)
    - zero-pad num_labels up to a lane/tile-aligned size
    """
    num_labels, dim = weight.shape
    n_pad = _round_up(num_labels, max(tile_n, _LANE))
    w_t = jnp.zeros((dim, n_pad), dtype=compute_dtype)
    w_t = w_t.at[:, :num_labels].set(weight.T.astype(compute_dtype))
    b2d = jnp.zeros((1, n_pad), dtype=jnp.float32)
    b2d = b2d.at[:, :num_labels].set(bias.astype(jnp.float32))
    return w_t, b2d, num_labels


@functools.partial(jax.jit, static_argnames=("num_labels", "tile_n"))
def linear_classifier_forward(x, w_t, b2d, *, num_labels, tile_n=_TN):
    """Forward pass of LinearClassifier.

    x   : (B, C, H, W) f32 — frozen features (NCHW)
    w_t : (dim, n_pad) bf16 — pre-transposed, padded weight from prepare_params
    b2d : (1, n_pad)   f32  — padded bias row
    returns: (B, num_labels) f32
    """
    B = x.shape[0]
    x2d = x.reshape(B, -1)                      # x.view(x.size(0), -1)
    dim = x2d.shape[1]
    n_pad = w_t.shape[1]
    assert w_t.shape[0] == dim and n_pad % tile_n == 0
    n_tiles = n_pad // tile_n

    cost = pl.CostEstimate(
        flops=2 * B * dim * n_pad,
        bytes_accessed=(x2d.size * x2d.dtype.itemsize
                        + w_t.size * w_t.dtype.itemsize
                        + b2d.size * b2d.dtype.itemsize
                        + B * n_pad * x2d.dtype.itemsize),
        transcendentals=0,
    )

    out = pl.pallas_call(
        _linear_kernel,
        out_shape=jax.ShapeDtypeStruct((B, n_pad), x2d.dtype),
        grid_spec=pl.GridSpec(
            grid=(n_tiles,),
            in_specs=[
                pl.BlockSpec((B, dim), lambda j: (0, 0)),       # x: resident
                pl.BlockSpec((dim, tile_n), lambda j: (0, j)),  # weight tile
                pl.BlockSpec((1, tile_n), lambda j: (0, j)),    # bias tile
            ],
            out_specs=pl.BlockSpec((B, tile_n), lambda j: (0, j)),
        ),
        compiler_params=pltpu.CompilerParams(
            dimension_semantics=("parallel",),   # megacore sharding on v7x
        ),
        cost_estimate=cost,
    )(x2d, w_t, b2d)

    return out[:, :num_labels]                  # drop the label padding


if __name__ == "__main__":
    # Shapes consistent with the module: frozen-feature maps (B=2, C=4, H=16,
    # W=16) -> dim = 4*16*16 = 1024, num_labels = 1000.
    key = jax.random.PRNGKey(0)
    kx, kw = jax.random.split(key)

    B, C, H, W = 2, 4, 16, 16
    dim = C * H * W
    num_labels = 1000

    x = jax.random.normal(kx, (B, C, H, W), dtype=jnp.float32)

    # Deterministic param init matching the module: weight ~ N(0, 0.01), bias = 0.
    weight = 0.01 * jax.random.normal(kw, (num_labels, dim), dtype=jnp.float32)
    bias = jnp.zeros((num_labels,), dtype=jnp.float32)

    # One-time prep (transpose + bf16 cast + pad) — outside the hot path.
    w_t, b2d, nl = prepare_params(weight, bias)

    out = linear_classifier_forward(x, w_t, b2d, num_labels=nl)
    out = jax.block_until_ready(out)
    assert out.shape == (B, num_labels)

    # Reference matching the kernel's bf16-weight / f32-accumulate numerics.
    x2d_bf = x.reshape(B, -1).astype(jnp.bfloat16).astype(jnp.float32)
    w_bf = weight.astype(jnp.bfloat16).astype(jnp.float32)
    ref_bf = x2d_bf @ w_bf.T + bias
    assert jnp.allclose(out, ref_bf, atol=1e-3, rtol=1e-3)

    # Coarse check against the full-f32 reference (semantics sanity).
    ref_f32 = x.reshape(B, -1) @ weight.T + bias
    assert jnp.allclose(out, ref_f32, atol=5e-2, rtol=5e-2)

    print("KERNEL_OK")
</pallas_src>

<mosaic_0001>
module attributes {stable_mosaic.version = 11 : i64} {
  func.func @_linear_kernel(%arg0: i32, %arg1: memref<2x1024xf32, #tpu.memory_space<vmem>>, %arg2: memref<1024x256xbf16, #tpu.memory_space<vmem>>, %arg3: memref<1x256xf32, #tpu.memory_space<vmem>>, %arg4: memref<2x256xf32, #tpu.memory_space<vmem>>) attributes {dimension_semantics = [#tpu.dimension_semantics<parallel>], iteration_bounds = array<i64: 4>, scalar_prefetch = 0 : i64, scratch_operands = 0 : i64, tpu.core_type = #tpu.core_type<tc>, window_params = [{pipeline_mode = #tpu.pipeline_mode<synchronous>, transform_indices = @transform_0, window_bounds = array<i64: 2, 1024>}, {transform_indices = @transform_1, window_bounds = array<i64: 1024, 256>}, {transform_indices = @transform_2, window_bounds = array<i64: 1, 256>}, {transform_indices = @transform_3, window_bounds = array<i64: 2, 256>}]} {
    %c0 = arith.constant 0 : index
    %c0_0 = arith.constant 0 : index
    %0 = vector.load %arg1[%c0, %c0_0] : memref<2x1024xf32, #tpu.memory_space<vmem>>, vector<2x1024xf32>
    %1 = arith.truncf %0 : vector<2x1024xf32> to vector<2x1024xbf16>
    %c0_1 = arith.constant 0 : index
    %c0_2 = arith.constant 0 : index
    %2 = vector.load %arg2[%c0_1, %c0_2] : memref<1024x256xbf16, #tpu.memory_space<vmem>>, vector<1024x256xbf16>
    %cst = arith.constant dense<0.000000e+00> : vector<2x256xf32>
    %3 = tpu.matmul %1, %2, %cst {dimension_numbers = #tpu.dot_dimension_numbers<[1], [0], [0], [1], [0, 0, 1, 1], [], []>} : vector<2x1024xbf16>, vector<1024x256xbf16>, vector<2x256xf32> -> vector<2x256xf32>
    %c0_3 = arith.constant 0 : index
    %c0_4 = arith.constant 0 : index
    %4 = vector.load %arg3[%c0_3, %c0_4] : memref<1x256xf32, #tpu.memory_space<vmem>>, vector<1x256xf32>
    %5 = vector.broadcast %4 : vector<1x256xf32> to vector<2x256xf32>
    %6 = arith.addf %3, %5 : vector<2x256xf32>
    %c0_5 = arith.constant 0 : index
    %c0_6 = arith.constant 0 : index
    %7 = vector.load %arg4[%c0_5, %c0_6] : memref<2x256xf32, #tpu.memory_space<vmem>>, vector<2x256xf32>
    tpu.vector_store %arg4[%c0_5, %c0_6], %6 {strides = array<i32>} : memref<2x256xf32, #tpu.memory_space<vmem>>, vector<2x256xf32>,
    return
  }
  func.func @transform_0(%arg0: i32) -> (i32, i32) {
    %c0_i32 = arith.constant 0 : i32
    %c0_i32_0 = arith.constant 0 : i32
    %c0_i32_1 = arith.constant 0 : i32
    return %c0_i32, %c0_i32_0 : i32, i32
  }
  func.func @transform_1(%arg0: i32) -> (i32, i32) {
    %c0_i32 = arith.constant 0 : i32
    %c0_i32_0 = arith.constant 0 : i32
    return %c0_i32, %arg0 : i32, i32
  }
  func.func @transform_2(%arg0: i32) -> (i32, i32) {
    %c0_i32 = arith.constant 0 : i32
    %c0_i32_0 = arith.constant 0 : i32
    return %c0_i32, %arg0 : i32, i32
  }
  func.func @transform_3(%arg0: i32) -> (i32, i32) {
    %c0_i32 = arith.constant 0 : i32
    %c0_i32_0 = arith.constant 0 : i32
    return %c0_i32, %arg0 : i32, i32
  }
}

</mosaic_0001>

<llo_original>
// kernel: linear_classifier_forward.1
$region0: #{linear_classifier_forward.1}
  #allocation0 [shape = 'u32[]', space=smem, size = 0x4, offset = 0x4, fixed_abs, tag = 'smem constant byte address 0x4 - core index']
  #allocation1 [shape = 'u32[72,128]{1,0:T(1,128)}', space=vmem, size = 0x9000, scoped, tag = 'internal scratch']
  %s0 = inlined_call_operand.vmem [shape: f32[2,1024], index: 0, kind: input, shape index: {}]
  %s1 = inlined_call_operand.hbm [shape: bf16[1024,1024], index: 1, kind: input, shape index: {}]
  %s2 = inlined_call_operand.hbm [shape: f32[1,1024], index: 2, kind: input, shape index: {}]
  %s3 = inlined_call_operand.hbm [shape: f32[2,1024], index: 3, kind: output, shape index: {}]
  %s4 = sld [smem:[#allocation0]]
  $region53: #{linear_classifier_forward.1} parent=0
    _
  %s6 = ssub.s32 1, %s4
  %s7 = scalar_select 0, %s6, %s4
  $region1: #{linear_classifier_forward.1} parent=0
    #allocation2 [shape = 'u8[1048576]{0}', space=vmem, size = 0x100000, scoped, tag = 'input window, operand 1']
    #allocation3 [shape = 's32[2]{0}', space=sflag, size = 0x8, scoped, tag = 'scoped memory for linear_classifier_forward.1']
    #allocation4 [shape = 's32[2]{0}', space=sflag, size = 0x8, scoped, tag = 'scoped memory for linear_classifier_forward.1']
    #allocation5 [shape = 'u8[2048]{0}', space=vmem, size = 0x800, scoped, tag = 'input window, operand 2']
    #allocation6 [shape = 's32[2]{0}', space=sflag, size = 0x8, scoped, tag = 'scoped memory for linear_classifier_forward.1']
    #allocation7 [shape = 'u8[4096]{0}', space=vmem, size = 0x1000, scoped, tag = 'output window, operand 0']
    %8 = vsyncpa [#allocation3], 0
    %s9 = scalar_lea.sflag [#allocation3], 1
    %10 = vsyncpa %s9, 0
    %11 = vsyncpa [#allocation6], 0
    %s12 = scalar_lea.sflag [#allocation6], 1
    %13 = vsyncpa %s12, 0
    %14 = vsyncpa [#allocation4], 0
    %s15 = scalar_lea.sflag [#allocation4], 1
    %16 = vsyncpa %s15, 0
    loop: start=0, step=1, limit=6
    $region2: #{linear_classifier_forward.1} parent=1 // loop_pre_header
      _
    $region3: #{linear_classifier_forward.1} parent=1 // loop_header
      %s18 = sphi 0, %s22
      %p19 = scmp.ge.s32.totalorder %s18, 6
      %s26 = sphi 0, %s26
      %s28 = sphi 0, %s26
      %s29 = sphi 0, %s28
      %s43 = sphi 0, %s29
      %s49 = sphi 0, %s51
      %s52 = sphi 0, %s49
      %s53 = sphi 0, %s52
      %s69 = sphi 0, %s53
      %s75 = sphi 0, %s77
      %s78 = sphi 0, %s75
      %s79 = sphi 0, %s78
      %s95 = sphi 0, %s79
      %s101 = sphi 0, %s103
      %s104 = sphi 0, %s101
      %s105 = sphi 0, %s104
      %s121 = sphi 0, %s105
    $region4: #{linear_classifier_forward.1} parent=1 // loop_header_branch
      %21 = sbr.rel (%p19) target = $region8
    $region5: #{linear_classifier_forward.1} parent=1 // loop_body
      %s23 = ssub.s32 %s18, 1
      %s24 = ssub.s32 %s18, 2
      %s25 = sadd.s32 %s18, 1
      %s27 = sadd.s32 %s26, 1
      %p30 = scmp.eq.s32.totalorder %s18, 3
      %p31 = scmp.ne.s32.totalorder %s26, %s28
      %p32 = scmp.eq.s32.totalorder %s18, 0
      %p33 = por %p31, %p32
      %p34 = scmp.ne.s32.totalorder %s26, %s28
      %p35 = scmp.eq.s32.totalorder %s23, 3
      %p36 = por %p34, %p35
      %p37 = scmp.ne.s32.totalorder %s28, %s29
      %p38 = scmp.eq.s32.totalorder %s23, 0
      %p39 = por %p37, %p38
      %p40 = scmp.ne.s32.totalorder %s28, %s29
      %p41 = scmp.eq.s32.totalorder %s24, 3
      %p42 = por %p40, %p41
      %p44 = scmp.ne.s32.totalorder %s29, %s43
      %p45 = scmp.eq.s32.totalorder %s24, 0
      %p46 = por %p44, %p45
      %s47 = ssub.s32 %s18, %s25
      %p48 = scmp.eq.s32.totalorder %s47, 0
      %s50 = sadd.s32 %s49, 1
      %s51 = scalar_select %p48, %s49, %s50
      %p54 = pneg %p48
      %p55 = scmp.eq.s32.totalorder %s18, 3
      %p56 = por %p54, %p55
      %p57 = scmp.ne.s32.totalorder %s49, %s52
      %p58 = scmp.eq.s32.totalorder %s18, 0
      %p59 = por %p57, %p58
      %p60 = scmp.ne.s32.totalorder %s49, %s52
      %p61 = scmp.eq.s32.totalorder %s23, 3
      %p62 = por %p60, %p61
      %p63 = scmp.ne.s32.totalorder %s52, %s53
      %p64 = scmp.eq.s32.totalorder %s23, 0
      %p65 = por %p63, %p64
      %p66 = scmp.ne.s32.totalorder %s52, %s53
      %p67 = scmp.eq.s32.totalorder %s24, 3
      %p68 = por %p66, %p67
      %p70 = scmp.ne.s32.totalorder %s53, %s69
      %p71 = scmp.eq.s32.totalorder %s24, 0
      %p72 = por %p70, %p71
      %s73 = ssub.s32 %s18, %s25
      %p74 = scmp.eq.s32.totalorder %s73, 0
      %s76 = sadd.s32 %s75, 1
      %s77 = scalar_select %p74, %s75, %s76
      %p80 = pneg %p74
      %p81 = scmp.eq.s32.totalorder %s18, 3
      %p82 = por %p80, %p81
      %p83 = scmp.ne.s32.totalorder %s75, %s78
      %p84 = scmp.eq.s32.totalorder %s18, 0
      %p85 = por %p83, %p84
      %p86 = scmp.ne.s32.totalorder %s75, %s78
      %p87 = scmp.eq.s32.totalorder %s23, 3
      %p88 = por %p86, %p87
      %p89 = scmp.ne.s32.totalorder %s78, %s79
      %p90 = scmp.eq.s32.totalorder %s23, 0
      %p91 = por %p89, %p90
      %p92 = scmp.ne.s32.totalorder %s78, %s79
      %p93 = scmp.eq.s32.totalorder %s24, 3
      %p94 = por %p92, %p93
      %p96 = scmp.ne.s32.totalorder %s79, %s95
      %p97 = scmp.eq.s32.totalorder %s24, 0
      %p98 = por %p96, %p97
      %s99 = ssub.s32 %s18, %s25
      %p100 = scmp.eq.s32.totalorder %s99, 0
      %s102 = sadd.s32 %s101, 1
      %s103 = scalar_select %p100, %s101, %s102
      %p106 = pneg %p100
      %p107 = scmp.eq.s32.totalorder %s18, 3
      %p108 = por %p106, %p107
      %p109 = scmp.ne.s32.totalorder %s101, %s104
      %p110 = scmp.eq.s32.totalorder %s18, 0
      %p111 = por %p109, %p110
      %p112 = scmp.ne.s32.totalorder %s101, %s104
      %p113 = scmp.eq.s32.totalorder %s23, 3
      %p114 = por %p112, %p113
      %p115 = scmp.ne.s32.totalorder %s104, %s105
      %p116 = scmp.eq.s32.totalorder %s23, 0
      %p117 = por %p115, %p116
      %p118 = scmp.ne.s32.totalorder %s104, %s105
      %p119 = scmp.eq.s32.totalorder %s24, 3
      %p120 = por %p118, %p119
      %p122 = scmp.ne.s32.totalorder %s105, %s121
      %p123 = scmp.eq.s32.totalorder %s24, 0
      %p124 = por %p122, %p123
      %p125 = scmp.le.s32.totalorder 1, %s18
      %p126 = scmp.lt.s32.totalorder %s18, 5
      %p127 = pnand %p125, %p126
      %p128 = pneg %p127
      // Predicated region
      $region9: #{linear_classifier_forward.1} parent=5 // pred_check
        _
      $region10: #{linear_classifier_forward.1} parent=5 // pred_check_branch
        %130 = sbr.rel (%p127) target = $region12
      $region11: #{linear_classifier_forward.1} parent=5 // pred_region
        %s131 = ssub.s32 %s18, 1
        // Predicated region
        $region13: #{linear_classifier_forward.1} parent=11 // pred_check
          %p132 = pneg %p39
        $region14: #{linear_classifier_forward.1} parent=11 // pred_check_branch
          %134 = sbr.rel (%p132) target = $region16
        $region15: #{linear_classifier_forward.1} parent=11 // pred_region
          _
        $region16: #{linear_classifier_forward.1} parent=11 // pred_fallthru
          _
      $region12: #{linear_classifier_forward.1} parent=5 // pred_fallthru
        _
      %p135 = scmp.lt.s32.totalorder %s18, 4
      // Predicated region
      $region17: #{linear_classifier_forward.1} parent=5 // pred_check
        %p136 = pneg %p135
      $region18: #{linear_classifier_forward.1} parent=5 // pred_check_branch
        %138 = sbr.rel (%p136) target = $region20
      $region19: #{linear_classifier_forward.1} parent=5 // pred_region
        // Predicated region
        $region21: #{linear_classifier_forward.1} parent=19 // pred_check
          %p139 = pneg %p59
        $region22: #{linear_classifier_forward.1} parent=19 // pred_check_branch
          %141 = sbr.rel (%p139) target = $region24
        $region23: #{linear_classifier_forward.1} parent=19 // pred_region
          %s142 = sand.u32 %s49, 1
          %s143 = scalar_lea.sflag [#allocation3], %s142
          %s144 = sand.u32 %s49, 1
          %s145 = smul.addr %s144, 1024
          %s146 = scalar_lea.vmem [#allocation2], %s145
          %s147 = smul.u32 2, %s18
          %149 = vsyncadd %s143, 0
          %s150 = smul.addr %s147, 4
          %s151 = scalar_lea.hbm %s1, %s150
          %s152 = sshll.u32 %s151, 4
          %s153 = int_to_ptr.hbm [resolvable:$true] %s152
          %s154 = sshll.u32 %s146, 4
          %s155 = int_to_ptr.vmem [resolvable:$true] %s154
          %160 = dma.hbm_to_vmem [thread:$0]  %s153, 16384, %s155, %s143, 512, 128, 8
        $region24: #{linear_classifier_forward.1} parent=19 // pred_fallthru
          _
        // Predicated region
        $region25: #{linear_classifier_forward.1} parent=19 // pred_check
          %p161 = pneg %p85
        $region26: #{linear_classifier_forward.1} parent=19 // pred_check_branch
          %163 = sbr.rel (%p161) target = $region28
        $region27: #{linear_classifier_forward.1} parent=19 // pred_region
          %s164 = sand.u32 %s75, 1
          %s165 = scalar_lea.sflag [#allocation6], %s164
          %s166 = sand.u32 %s75, 1
          %s167 = smul.addr %s166, 2
          %s168 = scalar_lea.vmem [#allocation5], %s167
          %s169 = smul.u32 2, %s18
          %171 = vsyncadd %s165, 0
          %s172 = scalar_lea.hbm %s2, %s169
          %s174 = sshll.u32 %s172, 4
          %s175 = int_to_ptr.hbm [resolvable:$true] %s174
          %s176 = sshll.u32 %s168, 4
          %s177 = int_to_ptr.vmem [resolvable:$true] %s176
          %179 = dma.hbm_to_vmem [thread:$0]  %s175, 32, %s177, %s165
        $region28: #{linear_classifier_forward.1} parent=19 // pred_fallthru
          _
      $region20: #{linear_classifier_forward.1} parent=5 // pred_fallthru
        _
      %p180 = scmp.le.s32.totalorder 1, %s18
      %p181 = scmp.lt.s32.totalorder %s18, 5
      %p182 = pnand %p180, %p181
      %p183 = pneg %p182
      // Predicated region
      $region29: #{linear_classifier_forward.1} parent=5 // pred_check
        _
      $region30: #{linear_classifier_forward.1} parent=5 // pred_check_branch
        %185 = sbr.rel (%p182) target = $region32
      $region31: #{linear_classifier_forward.1} parent=5 // pred_region
        %s186 = ssub.s32 %s18, 1
        %s187 = sand.u32 %s52, 1
        %s188 = scalar_lea.sflag [#allocation3], %s187
        %s189 = sand.u32 %s52, 1
        %s190 = smul.addr %s189, 1024
        %s191 = scalar_lea.vmem [#allocation2], %s190
        // Predicated region
        $region33: #{linear_classifier_forward.1} parent=31 // pred_check
          %p192 = pneg %p65
        $region34: #{linear_classifier_forward.1} parent=31 // pred_check_branch
          %194 = sbr.rel (%p192) target = $region36
        $region35: #{linear_classifier_forward.1} parent=31 // pred_region
          %196 = dma.done %s188, 16384
        $region36: #{linear_classifier_forward.1} parent=31 // pred_fallthru
          _
        %s197 = sand.u32 %s78, 1
        %s198 = scalar_lea.sflag [#allocation6], %s197
        %s199 = sand.u32 %s78, 1
        %s200 = smul.addr %s199, 2
        %s201 = scalar_lea.vmem [#allocation5], %s200
        // Predicated region
        $region37: #{linear_classifier_forward.1} parent=31 // pred_check
          %p202 = pneg %p91
        $region38: #{linear_classifier_forward.1} parent=31 // pred_check_branch
          %204 = sbr.rel (%p202) target = $region40
        $region39: #{linear_classifier_forward.1} parent=31 // pred_region
          %206 = dma.done %s198, 32
        $region40: #{linear_classifier_forward.1} parent=31 // pred_fallthru
          _
        %p207 = pneg %p39
        %p208 = pneg %p36
        %s209 = sand.u32 %s52, 1
        %s210 = scalar_lea.sflag [#allocation3], %s209
        %s211 = sand.u32 %s52, 1
        %s212 = smul.addr %s211, 1024
        %s213 = scalar_lea.vmem [#allocation2], %s212
        %p214 = pneg %p65
        %p215 = pneg %p62
        %s216 = sand.u32 %s78, 1
        %s217 = scalar_lea.sflag [#allocation6], %s216
        %s218 = sand.u32 %s78, 1
        %s219 = smul.addr %s218, 2
        %s220 = scalar_lea.vmem [#allocation5], %s219
        %p221 = pneg %p91
        %p222 = pneg %p88
        %p223 = pneg %p117
        %p224 = pneg %p114
        %s225 = sand.u32 %s104, 1
        %s226 = scalar_lea.sflag [#allocation4], %s225
        %s227 = sand.u32 %s104, 1
        %s228 = smul.addr %s227, 4
        %s229 = scalar_lea.vmem [#allocation7], %s228
        %s230 = smul.u32 2, %s23
        %s231 = smul.u32 2, %s23
        %s232 = smul.u32 2, %s23
        %v233 = vld [vmem:[%s0] sm:$0xff]
        %v234 = vld [vmem:[%s0 + $0x8] sm:$0xff]
        %237 = vst [vmem:[#allocation1] ss:$4 sm:$0xff] %v233
        %s238 = scalar_lea.vmem [#allocation1], 32
        %239 = vst [vmem:[%s238] ss:$4 sm:$0xff] %v234
        %v240 = vld.sshfl [vmem:[#allocation1] sm:$0xff pattern:$0x73625140]
        %v241 = vld.sshfl [vmem:[#allocation1 + $0x8] sm:$0xff pattern:$0x73625140]
        %v242 = vld.sshfl [vmem:[#allocation1 + $0x10] sm:$0xff pattern:$0x73625140]
        %v243 = vld.sshfl [vmem:[#allocation1 + $0x18] sm:$0xff pattern:$0x73625140]
        %v244 = vld.sshfl [vmem:[#allocation1 + $0x20] sm:$0xff pattern:$0x73625140]
        %v245 = vld.sshfl [vmem:[#allocation1 + $0x28] sm:$0xff pattern:$0x73625140]
        %v246 = vld.sshfl [vmem:[#allocation1 + $0x30] sm:$0xff pattern:$0x73625140]
        %v247 = vld.sshfl [vmem:[#allocation1 + $0x38] sm:$0xff pattern:$0x73625140]
        %v256 = vpack.c.bf16 %v240, %v240
        %v257 = vpack.c.bf16 %v241, %v241
        %v258 = vpack.c.bf16 %v242, %v242
        %v259 = vpack.c.bf16 %v243, %v243
        %v260 = vpack.c.bf16 %v244, %v244
        %v261 = vpack.c.bf16 %v245, %v245
        %v262 = vpack.c.bf16 %v246, %v246
        %v263 = vpack.c.bf16 %v247, %v247
        %v264 = vld [vmem:[%s191] sm:$0xff]
        %v265 = vld [vmem:[%s191 + $0x8] sm:$0xff]
        %v266 = vld [vmem:[%s191 + $0x10] sm:$0xff]
        %v267 = vld [vmem:[%s191 + $0x18] sm:$0xff]
        %v268 = vld [vmem:[%s191 + $0x20] sm:$0xff]
        %v269 = vld [vmem:[%s191 + $0x28] sm:$0xff]
        %v270 = vld [vmem:[%s191 + $0x30] sm:$0xff]
        %v271 = vld [vmem:[%s191 + $0x38] sm:$0xff]
        %v272 = vld [vmem:[%s191 + $0x40] sm:$0xff]
        %v273 = vld [vmem:[%s191 + $0x48] sm:$0xff]
        %v274 = vld [vmem:[%s191 + $0x50] sm:$0xff]
        %v275 = vld [vmem:[%s191 + $0x58] sm:$0xff]
        %v276 = vld [vmem:[%s191 + $0x60] sm:$0xff]
        %v277 = vld [vmem:[%s191 + $0x68] sm:$0xff]
        %v278 = vld [vmem:[%s191 + $0x70] sm:$0xff]
        %v279 = vld [vmem:[%s191 + $0x78] sm:$0xff]
        %v280 = vld [vmem:[%s191 + $0x80] sm:$0xff]
        %v281 = vld [vmem:[%s191 + $0x88] sm:$0xff]
        %v282 = vld [vmem:[%s191 + $0x90] sm:$0xff]
        %v283 = vld [vmem:[%s191 + $0x98] sm:$0xff]
        %v284 = vld [vmem:[%s191 + $0xa0] sm:$0xff]
        %v285 = vld [vmem:[%s191 + $0xa8] sm:$0xff]
        %v286 = vld [vmem:[%s191 + $0xb0] sm:$0xff]
        %v287 = vld [vmem:[%s191 + $0xb8] sm:$0xff]
        %v288 = vld [vmem:[%s191 + $0xc0] sm:$0xff]
        %v289 = vld [vmem:[%s191 + $0xc8] sm:$0xff]
        %v290 = vld [vmem:[%s191 + $0xd0] sm:$0xff]
        %v291 = vld [vmem:[%s191 + $0xd8] sm:$0xff]
        %v292 = vld [vmem:[%s191 + $0xe0] sm:$0xff]
        %v293 = vld [vmem:[%s191 + $0xe8] sm:$0xff]
        %v294 = vld [vmem:[%s191 + $0xf0] sm:$0xff]
        %v295 = vld [vmem:[%s191 + $0xf8] sm:$0xff]
        %v296 = vld [vmem:[%s191 + $0x100] sm:$0xff]
        %v297 = vld [vmem:[%s191 + $0x108] sm:$0xff]
        %v298 = vld [vmem:[%s191 + $0x110] sm:$0xff]
        %v299 = vld [vmem:[%s191 + $0x118] sm:$0xff]
        %v300 = vld [vmem:[%s191 + $0x120] sm:$0xff]
        %v301 = vld [vmem:[%s191 + $0x128] sm:$0xff]
        %v302 = vld [vmem:[%s191 + $0x130] sm:$0xff]
        %v303 = vld [vmem:[%s191 + $0x138] sm:$0xff]
        %v304 = vld [vmem:[%s191 + $0x140] sm:$0xff]
        %v305 = vld [vmem:[%s191 + $0x148] sm:$0xff]
        %v306 = vld [vmem:[%s191 + $0x150] sm:$0xff]
        %v307 = vld [vmem:[%s191 + $0x158] sm:$0xff]
        %v308 = vld [vmem:[%s191 + $0x160] sm:$0xff]
        %v309 = vld [vmem:[%s191 + $0x168] sm:$0xff]
        %v310 = vld [vmem:[%s191 + $0x170] sm:$0xff]
        %v311 = vld [vmem:[%s191 + $0x178] sm:$0xff]
        %v312 = vld [vmem:[%s191 + $0x180] sm:$0xff]
        %v313 = vld [vmem:[%s191 + $0x188] sm:$0xff]
        %v314 = vld [vmem:[%s191 + $0x190] sm:$0xff]
        %v315 = vld [vmem:[%s191 + $0x198] sm:$0xff]
        %v316 = vld [vmem:[%s191 + $0x1a0] sm:$0xff]
        %v317 = vld [vmem:[%s191 + $0x1a8] sm:$0xff]
        %v318 = vld [vmem:[%s191 + $0x1b0] sm:$0xff]
        %v319 = vld [vmem:[%s191 + $0x1b8] sm:$0xff]
        %v320 = vld [vmem:[%s191 + $0x1c0] sm:$0xff]
        %v321 = vld [vmem:[%s191 + $0x1c8] sm:$0xff]
        %v322 = vld [vmem:[%s191 + $0x1d0] sm:$0xff]
        %v323 = vld [vmem:[%s191 + $0x1d8] sm:$0xff]
        %v324 = vld [vmem:[%s191 + $0x1e0] sm:$0xff]
        %v325 = vld [vmem:[%s191 + $0x1e8] sm:$0xff]
        %v326 = vld [vmem:[%s191 + $0x1f0] sm:$0xff]
        %v327 = vld [vmem:[%s191 + $0x1f8] sm:$0xff]
        %v328 = vld [vmem:[%s191 + $0x200] sm:$0xff]
        %v329 = vld [vmem:[%s191 + $0x208] sm:$0xff]
        %v330 = vld [vmem:[%s191 + $0x210] sm:$0xff]
        %v331 = vld [vmem:[%s191 + $0x218] sm:$0xff]
        %v332 = vld [vmem:[%s191 + $0x220] sm:$0xff]
        %v333 = vld [vmem:[%s191 + $0x228] sm:$0xff]
        %v334 = vld [vmem:[%s191 + $0x230] sm:$0xff]
        %v335 = vld [vmem:[%s191 + $0x238] sm:$0xff]
        %v336 = vld [vmem:[%s191 + $0x240] sm:$0xff]
        %v337 = vld [vmem:[%s191 + $0x248] sm:$0xff]
        %v338 = vld [vmem:[%s191 + $0x250] sm:$0xff]
        %v339 = vld [vmem:[%s191 + $0x258] sm:$0xff]
        %v340 = vld [vmem:[%s191 + $0x260] sm:$0xff]
        %v341 = vld [vmem:[%s191 + $0x268] sm:$0xff]
        %v342 = vld [vmem:[%s191 + $0x270] sm:$0xff]
        %v343 = vld [vmem:[%s191 + $0x278] sm:$0xff]
        %v344 = vld [vmem:[%s191 + $0x280] sm:$0xff]
        %v345 = vld [vmem:[%s191 + $0x288] sm:$0xff]
        %v346 = vld [vmem:[%s191 + $0x290] sm:$0xff]
        %v347 = vld [vmem:[%s191 + $0x298] sm:$0xff]
        %v348 = vld [vmem:[%s191 + $0x2a0] sm:$0xff]
        %v349 = vld [vmem:[%s191 + $0x2a8] sm:$0xff]
        %v350 = vld [vmem:[%s191 + $0x2b0] sm:$0xff]
        %v351 = vld [vmem:[%s191 + $0x2b8] sm:$0xff]
        %v352 = vld [vmem:[%s191 + $0x2c0] sm:$0xff]
        %v353 = vld [vmem:[%s191 + $0x2c8] sm:$0xff]
        %v354 = vld [vmem:[%s191 + $0x2d0] sm:$0xff]
        %v355 = vld [vmem:[%s191 + $0x2d8] sm:$0xff]
        %v356 = vld [vmem:[%s191 + $0x2e0] sm:$0xff]
        %v357 = vld [vmem:[%s191 + $0x2e8] sm:$0xff]
        %v358 = vld [vmem:[%s191 + $0x2f0] sm:$0xff]
        %v359 = vld [vmem:[%s191 + $0x2f8] sm:$0xff]
        %v360 = vld [vmem:[%s191 + $0x300] sm:$0xff]
        %v361 = vld [vmem:[%s191 + $0x308] sm:$0xff]
        %v362 = vld [vmem:[%s191 + $0x310] sm:$0xff]
        %v363 = vld [vmem:[%s191 + $0x318] sm:$0xff]
        %v364 = vld [vmem:[%s191 + $0x320] sm:$0xff]
        %v365 = vld [vmem:[%s191 + $0x328] sm:$0xff]
        %v366 = vld [vmem:[%s191 + $0x330] sm:$0xff]
        %v367 = vld [vmem:[%s191 + $0x338] sm:$0xff]
        %v368 = vld [vmem:[%s191 + $0x340] sm:$0xff]
        %v369 = vld [vmem:[%s191 + $0x348] sm:$0xff]
        %v370 = vld [vmem:[%s191 + $0x350] sm:$0xff]
        %v371 = vld [vmem:[%s191 + $0x358] sm:$0xff]
        %v372 = vld [vmem:[%s191 + $0x360] sm:$0xff]
        %v373 = vld [vmem:[%s191 + $0x368] sm:$0xff]
        %v374 = vld [vmem:[%s191 + $0x370] sm:$0xff]
        %v375 = vld [vmem:[%s191 + $0x378] sm:$0xff]
        %v376 = vld [vmem:[%s191 + $0x380] sm:$0xff]
        %v377 = vld [vmem:[%s191 + $0x388] sm:$0xff]
        %v378 = vld [vmem:[%s191 + $0x390] sm:$0xff]
        %v379 = vld [vmem:[%s191 + $0x398] sm:$0xff]
        %v380 = vld [vmem:[%s191 + $0x3a0] sm:$0xff]
        %v381 = vld [vmem:[%s191 + $0x3a8] sm:$0xff]
        %v382 = vld [vmem:[%s191 + $0x3b0] sm:$0xff]
        %v383 = vld [vmem:[%s191 + $0x3b8] sm:$0xff]
        %v384 = vld [vmem:[%s191 + $0x3c0] sm:$0xff]
        %v385 = vld [vmem:[%s191 + $0x3c8] sm:$0xff]
        %v386 = vld [vmem:[%s191 + $0x3d0] sm:$0xff]
        %v387 = vld [vmem:[%s191 + $0x3d8] sm:$0xff]
        %v388 = vld [vmem:[%s191 + $0x3e0] sm:$0xff]
        %v389 = vld [vmem:[%s191 + $0x3e8] sm:$0xff]
        %v390 = vld [vmem:[%s191 + $0x3f0] sm:$0xff]
        %v391 = vld [vmem:[%s191 + $0x3f8] sm:$0xff]
        %v392 = vld [vmem:[%s201] sm:$0x3]
        %v394 = vperm.slane %v392, 0
        %v395 = vperm.slane %v392, 1
        %v526 = vunpack.c.l.b16 %v264
        %v527 = vunpack.c.h.b16 %v264
        %v528 = vunpack.c.l.b16 %v265
        %v529 = vunpack.c.h.b16 %v265
        %v530 = vunpack.c.l.b16 %v266
        %v531 = vunpack.c.h.b16 %v266
        %v532 = vunpack.c.l.b16 %v267
        %v533 = vunpack.c.h.b16 %v267
        %v534 = vunpack.c.l.b16 %v268
        %v535 = vunpack.c.h.b16 %v268
        %v536 = vunpack.c.l.b16 %v269
        %v537 = vunpack.c.h.b16 %v269
        %v538 = vunpack.c.l.b16 %v270
        %v539 = vunpack.c.h.b16 %v270
        %v540 = vunpack.c.l.b16 %v271
        %v541 = vunpack.c.h.b16 %v271
        %v542 = vunpack.c.l.b16 %v272
        %v543 = vunpack.c.h.b16 %v272
        %v544 = vunpack.c.l.b16 %v273
        %v545 = vunpack.c.h.b16 %v273
        %v546 = vunpack.c.l.b16 %v274
        %v547 = vunpack.c.h.b16 %v274
        %v548 = vunpack.c.l.b16 %v275
        %v549 = vunpack.c.h.b16 %v275
        %v550 = vunpack.c.l.b16 %v276
        %v551 = vunpack.c.h.b16 %v276
        %v552 = vunpack.c.l.b16 %v277
        %v553 = vunpack.c.h.b16 %v277
        %v554 = vunpack.c.l.b16 %v278
        %v555 = vunpack.c.h.b16 %v278
        %v556 = vunpack.c.l.b16 %v279
        %v557 = vunpack.c.h.b16 %v279
        %v558 = vunpack.c.l.b16 %v280
        %v559 = vunpack.c.h.b16 %v280
        %v560 = vunpack.c.l.b16 %v281
        %v561 = vunpack.c.h.b16 %v281
        %v562 = vunpack.c.l.b16 %v282
        %v563 = vunpack.c.h.b16 %v282
        %v564 = vunpack.c.l.b16 %v283
        %v565 = vunpack.c.h.b16 %v283
        %v566 = vunpack.c.l.b16 %v284
        %v567 = vunpack.c.h.b16 %v284
        %v568 = vunpack.c.l.b16 %v285
        %v569 = vunpack.c.h.b16 %v285
        %v570 = vunpack.c.l.b16 %v286
        %v571 = vunpack.c.h.b16 %v286
        %v572 = vunpack.c.l.b16 %v287
        %v573 = vunpack.c.h.b16 %v287
        %v574 = vunpack.c.l.b16 %v288
        %v575 = vunpack.c.h.b16 %v288
        %v576 = vunpack.c.l.b16 %v289
        %v577 = vunpack.c.h.b16 %v289
        %v578 = vunpack.c.l.b16 %v290
        %v579 = vunpack.c.h.b16 %v290
        %v580 = vunpack.c.l.b16 %v291
        %v581 = vunpack.c.h.b16 %v291
        %v582 = vunpack.c.l.b16 %v292
        %v583 = vunpack.c.h.b16 %v292
        %v584 = vunpack.c.l.b16 %v293
        %v585 = vunpack.c.h.b16 %v293
        %v586 = vunpack.c.l.b16 %v294
        %v587 = vunpack.c.h.b16 %v294
        %v588 = vunpack.c.l.b16 %v295
        %v589 = vunpack.c.h.b16 %v295
        %v590 = vunpack.c.l.b16 %v296
        %v591 = vunpack.c.h.b16 %v296
        %v592 = vunpack.c.l.b16 %v297
        %v593 = vunpack.c.h.b16 %v297
        %v594 = vunpack.c.l.b16 %v298
        %v595 = vunpack.c.h.b16 %v298
        %v596 = vunpack.c.l.b16 %v299
        %v597 = vunpack.c.h.b16 %v299
        %v598 = vunpack.c.l.b16 %v300
        %v599 = vunpack.c.h.b16 %v300
        %v600 = vunpack.c.l.b16 %v301
        %v601 = vunpack.c.h.b16 %v301
        %v602 = vunpack.c.l.b16 %v302
        %v603 = vunpack.c.h.b16 %v302
        %v604 = vunpack.c.l.b16 %v303
        %v605 = vunpack.c.h.b16 %v303
        %v606 = vunpack.c.l.b16 %v304
        %v607 = vunpack.c.h.b16 %v304
        %v608 = vunpack.c.l.b16 %v305
        %v609 = vunpack.c.h.b16 %v305
        %v610 = vunpack.c.l.b16 %v306
        %v611 = vunpack.c.h.b16 %v306
        %v612 = vunpack.c.l.b16 %v307
        %v613 = vunpack.c.h.b16 %v307
        %v614 = vunpack.c.l.b16 %v308
        %v615 = vunpack.c.h.b16 %v308
        %v616 = vunpack.c.l.b16 %v309
        %v617 = vunpack.c.h.b16 %v309
        %v618 = vunpack.c.l.b16 %v310
        %v619 = vunpack.c.h.b16 %v310
        %v620 = vunpack.c.l.b16 %v311
        %v621 = vunpack.c.h.b16 %v311
        %v622 = vunpack.c.l.b16 %v312
        %v623 = vunpack.c.h.b16 %v312
        %v624 = vunpack.c.l.b16 %v313
        %v625 = vunpack.c.h.b16 %v313
        %v626 = vunpack.c.l.b16 %v314
        %v627 = vunpack.c.h.b16 %v314
        %v628 = vunpack.c.l.b16 %v315
        %v629 = vunpack.c.h.b16 %v315
        %v630 = vunpack.c.l.b16 %v316
        %v631 = vunpack.c.h.b16 %v316
        %v632 = vunpack.c.l.b16 %v317
        %v633 = vunpack.c.h.b16 %v317
        %v634 = vunpack.c.l.b16 %v318
        %v635 = vunpack.c.h.b16 %v318
        %v636 = vunpack.c.l.b16 %v319
        %v637 = vunpack.c.h.b16 %v319
        %v638 = vunpack.c.l.b16 %v320
        %v639 = vunpack.c.h.b16 %v320
        %v640 = vunpack.c.l.b16 %v321
        %v641 = vunpack.c.h.b16 %v321
        %v642 = vunpack.c.l.b16 %v322
        %v643 = vunpack.c.h.b16 %v322
        %v644 = vunpack.c.l.b16 %v323
        %v645 = vunpack.c.h.b16 %v323
        %v646 = vunpack.c.l.b16 %v324
        %v647 = vunpack.c.h.b16 %v324
        %v648 = vunpack.c.l.b16 %v325
        %v649 = vunpack.c.h.b16 %v325
        %v650 = vunpack.c.l.b16 %v326
        %v651 = vunpack.c.h.b16 %v326
        %v652 = vunpack.c.l.b16 %v327
        %v653 = vunpack.c.h.b16 %v327
        %v654 = vunpack.c.l.b16 %v328
        %v655 = vunpack.c.h.b16 %v328
        %v656 = vunpack.c.l.b16 %v329
        %v657 = vunpack.c.h.b16 %v329
        %v658 = vunpack.c.l.b16 %v330
        %v659 = vunpack.c.h.b16 %v330
        %v660 = vunpack.c.l.b16 %v331
        %v661 = vunpack.c.h.b16 %v331
        %v662 = vunpack.c.l.b16 %v332
        %v663 = vunpack.c.h.b16 %v332
        %v664 = vunpack.c.l.b16 %v333
        %v665 = vunpack.c.h.b16 %v333
        %v666 = vunpack.c.l.b16 %v334
        %v667 = vunpack.c.h.b16 %v334
        %v668 = vunpack.c.l.b16 %v335
        %v669 = vunpack.c.h.b16 %v335
        %v670 = vunpack.c.l.b16 %v336
        %v671 = vunpack.c.h.b16 %v336
        %v672 = vunpack.c.l.b16 %v337
        %v673 = vunpack.c.h.b16 %v337
        %v674 = vunpack.c.l.b16 %v338
        %v675 = vunpack.c.h.b16 %v338
        %v676 = vunpack.c.l.b16 %v339
        %v677 = vunpack.c.h.b16 %v339
        %v678 = vunpack.c.l.b16 %v340
        %v679 = vunpack.c.h.b16 %v340
        %v680 = vunpack.c.l.b16 %v341
        %v681 = vunpack.c.h.b16 %v341
        %v682 = vunpack.c.l.b16 %v342
        %v683 = vunpack.c.h.b16 %v342
        %v684 = vunpack.c.l.b16 %v343
        %v685 = vunpack.c.h.b16 %v343
        %v686 = vunpack.c.l.b16 %v344
        %v687 = vunpack.c.h.b16 %v344
        %v688 = vunpack.c.l.b16 %v345
        %v689 = vunpack.c.h.b16 %v345
        %v690 = vunpack.c.l.b16 %v346
        %v691 = vunpack.c.h.b16 %v346
        %v692 = vunpack.c.l.b16 %v347
        %v693 = vunpack.c.h.b16 %v347
        %v694 = vunpack.c.l.b16 %v348
        %v695 = vunpack.c.h.b16 %v348
        %v696 = vunpack.c.l.b16 %v349
        %v697 = vunpack.c.h.b16 %v349
        %v698 = vunpack.c.l.b16 %v350
        %v699 = vunpack.c.h.b16 %v350
        %v700 = vunpack.c.l.b16 %v351
        %v701 = vunpack.c.h.b16 %v351
        %v702 = vunpack.c.l.b16 %v352
        %v703 = vunpack.c.h.b16 %v352
        %v704 = vunpack.c.l.b16 %v353
        %v705 = vunpack.c.h.b16 %v353
        %v706 = vunpack.c.l.b16 %v354
        %v707 = vunpack.c.h.b16 %v354
        %v708 = vunpack.c.l.b16 %v355
        %v709 = vunpack.c.h.b16 %v355
        %v710 = vunpack.c.l.b16 %v356
        %v711 = vunpack.c.h.b16 %v356
        %v712 = vunpack.c.l.b16 %v357
        %v713 = vunpack.c.h.b16 %v357
        %v714 = vunpack.c.l.b16 %v358
        %v715 = vunpack.c.h.b16 %v358
        %v716 = vunpack.c.l.b16 %v359
        %v717 = vunpack.c.h.b16 %v359
        %v718 = vunpack.c.l.b16 %v360
        %v719 = vunpack.c.h.b16 %v360
        %v720 = vunpack.c.l.b16 %v361
        %v721 = vunpack.c.h.b16 %v361
        %v722 = vunpack.c.l.b16 %v362
        %v723 = vunpack.c.h.b16 %v362
        %v724 = vunpack.c.l.b16 %v363
        %v725 = vunpack.c.h.b16 %v363
        %v726 = vunpack.c.l.b16 %v364
        %v727 = vunpack.c.h.b16 %v364
        %v728 = vunpack.c.l.b16 %v365
        %v729 = vunpack.c.h.b16 %v365
        %v730 = vunpack.c.l.b16 %v366
        %v731 = vunpack.c.h.b16 %v366
        %v732 = vunpack.c.l.b16 %v367
        %v733 = vunpack.c.h.b16 %v367
        %v734 = vunpack.c.l.b16 %v368
        %v735 = vunpack.c.h.b16 %v368
        %v736 = vunpack.c.l.b16 %v369
        %v737 = vunpack.c.h.b16 %v369
        %v738 = vunpack.c.l.b16 %v370
        %v739 = vunpack.c.h.b16 %v370
        %v740 = vunpack.c.l.b16 %v371
        %v741 = vunpack.c.h.b16 %v371
        %v742 = vunpack.c.l.b16 %v372
        %v743 = vunpack.c.h.b16 %v372
        %v744 = vunpack.c.l.b16 %v373
        %v745 = vunpack.c.h.b16 %v373
        %v746 = vunpack.c.l.b16 %v374
        %v747 = vunpack.c.h.b16 %v374
        %v748 = vunpack.c.l.b16 %v375
        %v749 = vunpack.c.h.b16 %v375
        %v750 = vunpack.c.l.b16 %v376
        %v751 = vunpack.c.h.b16 %v376
        %v752 = vunpack.c.l.b16 %v377
        %v753 = vunpack.c.h.b16 %v377
        %v754 = vunpack.c.l.b16 %v378
        %v755 = vunpack.c.h.b16 %v378
        %v756 = vunpack.c.l.b16 %v379
        %v757 = vunpack.c.h.b16 %v379
        %v758 = vunpack.c.l.b16 %v380
        %v759 = vunpack.c.h.b16 %v380
        %v760 = vunpack.c.l.b16 %v381
        %v761 = vunpack.c.h.b16 %v381
        %v762 = vunpack.c.l.b16 %v382
        %v763 = vunpack.c.h.b16 %v382
        %v764 = vunpack.c.l.b16 %v383
        %v765 = vunpack.c.h.b16 %v383
        %v766 = vunpack.c.l.b16 %v384
        %v767 = vunpack.c.h.b16 %v384
        %v768 = vunpack.c.l.b16 %v385
        %v769 = vunpack.c.h.b16 %v385
        %v770 = vunpack.c.l.b16 %v386
        %v771 = vunpack.c.h.b16 %v386
        %v772 = vunpack.c.l.b16 %v387
        %v773 = vunpack.c.h.b16 %v387
        %v774 = vunpack.c.l.b16 %v388
        %v775 = vunpack.c.h.b16 %v388
        %v776 = vunpack.c.l.b16 %v389
        %v777 = vunpack.c.h.b16 %v389
        %v778 = vunpack.c.l.b16 %v390
        %v779 = vunpack.c.h.b16 %v390
        %v780 = vunpack.c.l.b16 %v391
        %v781 = vunpack.c.h.b16 %v391
        %v782 = vpack.c.b16 %v528, %v526
        %v783 = vpack.c.b16 %v529, %v527
        %v784 = vpack.c.b16 %v532, %v530
        %v785 = vpack.c.b16 %v533, %v531
        %v786 = vpack.c.b16 %v536, %v534
        %v787 = vpack.c.b16 %v537, %v535
        %v788 = vpack.c.b16 %v540, %v538
        %v789 = vpack.c.b16 %v541, %v539
        %v790 = vpack.c.b16 %v544, %v542
        %v791 = vpack.c.b16 %v545, %v543
        %v792 = vpack.c.b16 %v548, %v546
        %v793 = vpack.c.b16 %v549, %v547
        %v794 = vpack.c.b16 %v552, %v550
        %v795 = vpack.c.b16 %v553, %v551
        %v796 = vpack.c.b16 %v556, %v554
        %v797 = vpack.c.b16 %v557, %v555
        %v798 = vpack.c.b16 %v560, %v558
        %v799 = vpack.c.b16 %v561, %v559
        %v800 = vpack.c.b16 %v564, %v562
        %v801 = vpack.c.b16 %v565, %v563
        %v802 = vpack.c.b16 %v568, %v566
        %v803 = vpack.c.b16 %v569, %v567
        %v804 = vpack.c.b16 %v572, %v570
        %v805 = vpack.c.b16 %v573, %v571
        %v806 = vpack.c.b16 %v576, %v574
        %v807 = vpack.c.b16 %v577, %v575
        %v808 = vpack.c.b16 %v580, %v578
        %v809 = vpack.c.b16 %v581, %v579
        %v810 = vpack.c.b16 %v584, %v582
        %v811 = vpack.c.b16 %v585, %v583
        %v812 = vpack.c.b16 %v588, %v586
        %v813 = vpack.c.b16 %v589, %v587
        %v814 = vpack.c.b16 %v592, %v590
        %v815 = vpack.c.b16 %v593, %v591
        %v816 = vpack.c.b16 %v596, %v594
        %v817 = vpack.c.b16 %v597, %v595
        %v818 = vpack.c.b16 %v600, %v598
        %v819 = vpack.c.b16 %v601, %v599
        %v820 = vpack.c.b16 %v604, %v602
        %v821 = vpack.c.b16 %v605, %v603
        %v822 = vpack.c.b16 %v608, %v606
        %v823 = vpack.c.b16 %v609, %v607
        %v824 = vpack.c.b16 %v612, %v610
        %v825 = vpack.c.b16 %v613, %v611
        %v826 = vpack.c.b16 %v616, %v614
        %v827 = vpack.c.b16 %v617, %v615
        %v828 = vpack.c.b16 %v620, %v618
        %v829 = vpack.c.b16 %v621, %v619
        %v830 = vpack.c.b16 %v624, %v622
        %v831 = vpack.c.b16 %v625, %v623
        %v832 = vpack.c.b16 %v628, %v626
        %v833 = vpack.c.b16 %v629, %v627
        %v834 = vpack.c.b16 %v632, %v630
        %v835 = vpack.c.b16 %v633, %v631
        %v836 = vpack.c.b16 %v636, %v634
        %v837 = vpack.c.b16 %v637, %v635
        %v838 = vpack.c.b16 %v640, %v638
        %v839 = vpack.c.b16 %v641, %v639
        %v840 = vpack.c.b16 %v644, %v642
        %v841 = vpack.c.b16 %v645, %v643
        %v842 = vpack.c.b16 %v648, %v646
        %v843 = vpack.c.b16 %v649, %v647
        %v844 = vpack.c.b16 %v652, %v650
        %v845 = vpack.c.b16 %v653, %v651
        %v846 = vpack.c.b16 %v656, %v654
        %v847 = vpack.c.b16 %v657, %v655
        %v848 = vpack.c.b16 %v660, %v658
        %v849 = vpack.c.b16 %v661, %v659
        %v850 = vpack.c.b16 %v664, %v662
        %v851 = vpack.c.b16 %v665, %v663
        %v852 = vpack.c.b16 %v668, %v666
        %v853 = vpack.c.b16 %v669, %v667
        %v854 = vpack.c.b16 %v672, %v670
        %v855 = vpack.c.b16 %v673, %v671
        %v856 = vpack.c.b16 %v676, %v674
        %v857 = vpack.c.b16 %v677, %v675
        %v858 = vpack.c.b16 %v680, %v678
        %v859 = vpack.c.b16 %v681, %v679
        %v860 = vpack.c.b16 %v684, %v682
        %v861 = vpack.c.b16 %v685, %v683
        %v862 = vpack.c.b16 %v688, %v686
        %v863 = vpack.c.b16 %v689, %v687
        %v864 = vpack.c.b16 %v692, %v690
        %v865 = vpack.c.b16 %v693, %v691
        %v866 = vpack.c.b16 %v696, %v694
        %v867 = vpack.c.b16 %v697, %v695
        %v868 = vpack.c.b16 %v700, %v698
        %v869 = vpack.c.b16 %v701, %v699
        %v870 = vpack.c.b16 %v704, %v702
        %v871 = vpack.c.b16 %v705, %v703
        %v872 = vpack.c.b16 %v708, %v706
        %v873 = vpack.c.b16 %v709, %v707
        %v874 = vpack.c.b16 %v712, %v710
        %v875 = vpack.c.b16 %v713, %v711
        %v876 = vpack.c.b16 %v716, %v714
        %v877 = vpack.c.b16 %v717, %v715
        %v878 = vpack.c.b16 %v720, %v718
        %v879 = vpack.c.b16 %v721, %v719
        %v880 = vpack.c.b16 %v724, %v722
        %v881 = vpack.c.b16 %v725, %v723
        %v882 = vpack.c.b16 %v728, %v726
        %v883 = vpack.c.b16 %v729, %v727
        %v884 = vpack.c.b16 %v732, %v730
        %v885 = vpack.c.b16 %v733, %v731
        %v886 = vpack.c.b16 %v736, %v734
        %v887 = vpack.c.b16 %v737, %v735
        %v888 = vpack.c.b16 %v740, %v738
        %v889 = vpack.c.b16 %v741, %v739
        %v890 = vpack.c.b16 %v744, %v742
        %v891 = vpack.c.b16 %v745, %v743
        %v892 = vpack.c.b16 %v748, %v746
        %v893 = vpack.c.b16 %v749, %v747
        %v894 = vpack.c.b16 %v752, %v750
        %v895 = vpack.c.b16 %v753, %v751
        %v896 = vpack.c.b16 %v756, %v754
        %v897 = vpack.c.b16 %v757, %v755
        %v898 = vpack.c.b16 %v760, %v758
        %v899 = vpack.c.b16 %v761, %v759
        %v900 = vpack.c.b16 %v764, %v762
        %v901 = vpack.c.b16 %v765, %v763
        %v902 = vpack.c.b16 %v768, %v766
        %v903 = vpack.c.b16 %v769, %v767
        %v904 = vpack.c.b16 %v772, %v770
        %v905 = vpack.c.b16 %v773, %v771
        %v906 = vpack.c.b16 %v776, %v774
        %v907 = vpack.c.b16 %v777, %v775
        %v908 = vpack.c.b16 %v780, %v778
        %v909 = vpack.c.b16 %v781, %v779
        %1038 = vmatpush.bf16.msra.mxu0 %v796
        %1039 = vmatpush.bf16.msra.mxu0 %v794
        %1040 = vmatpush.bf16.msra.mxu0 %v792
        %1041 = vmatpush.bf16.msra.mxu0 %v790
        %1042 = vmatpush.bf16.msra.mxu0 %v788
        %1043 = vmatpush.bf16.msra.mxu0 %v786
        %1044 = vmatpush.bf16.msra.mxu0 %v784
        %1045 = vmatpush.bf16.msra.mxu0 %v782
        %1046 = vmatmul.bf16.gmra.mxu0 %v256
        %v1047 = vpop.f32.mrf.mxu0
        %v1048 = vadd.f32 %v394, %v1047
        %v1049 = vpop.f32.mrf.mxu0
        %1050 = vdwg.mxu0
        %1051 = vmatpush.bf16.msra.mxu0 %v812
        %1052 = vmatpush.bf16.msra.mxu0 %v810
        %1053 = vmatpush.bf16.msra.mxu0 %v808
        %1054 = vmatpush.bf16.msra.mxu0 %v806
        %1055 = vmatpush.bf16.msra.mxu0 %v804
        %1056 = vmatpush.bf16.msra.mxu0 %v802
        %1057 = vmatpush.bf16.msra.mxu0 %v800
        %1058 = vmatpush.bf16.msra.mxu0 %v798
        %1059 = vmatmul.bf16.gmra.mxu0 %v257
        %v1060 = vpop.f32.mrf.mxu0
        %v1061 = vadd.f32 %v1048, %v1060
        %v1062 = vpop.f32.mrf.mxu0
        %1063 = vdwg.mxu0
        %1064 = vmatpush.bf16.msra.mxu0 %v828
        %1065 = vmatpush.bf16.msra.mxu0 %v826
        %1066 = vmatpush.bf16.msra.mxu0 %v824
        %1067 = vmatpush.bf16.msra.mxu0 %v822
        %1068 = vmatpush.bf16.msra.mxu0 %v820
        %1069 = vmatpush.bf16.msra.mxu0 %v818
        %1070 = vmatpush.bf16.msra.mxu0 %v816
        %1071 = vmatpush.bf16.msra.mxu0 %v814
        %1072 = vmatmul.bf16.gmra.mxu0 %v258
        %v1073 = vpop.f32.mrf.mxu0
        %v1074 = vadd.f32 %v1061, %v1073
        %v1075 = vpop.f32.mrf.mxu0
        %1076 = vdwg.mxu0
        %1077 = vmatpush.bf16.msra.mxu0 %v844
        %1078 = vmatpush.bf16.msra.mxu0 %v842
        %1079 = vmatpush.bf16.msra.mxu0 %v840
        %1080 = vmatpush.bf16.msra.mxu0 %v838
        %1081 = vmatpush.bf16.msra.mxu0 %v836
        %1082 = vmatpush.bf16.msra.mxu0 %v834
        %1083 = vmatpush.bf16.msra.mxu0 %v832
        %1084 = vmatpush.bf16.msra.mxu0 %v830
        %1085 = vmatmul.bf16.gmra.mxu0 %v259
        %v1086 = vpop.f32.mrf.mxu0
        %v1087 = vadd.f32 %v1074, %v1086
        %v1088 = vpop.f32.mrf.mxu0
        %1089 = vdwg.mxu0
        %1090 = vmatpush.bf16.msra.mxu0 %v860
        %1091 = vmatpush.bf16.msra.mxu0 %v858
        %1092 = vmatpush.bf16.msra.mxu0 %v856
        %1093 = vmatpush.bf16.msra.mxu0 %v854
        %1094 = vmatpush.bf16.msra.mxu0 %v852
        %1095 = vmatpush.bf16.msra.mxu0 %v850
        %1096 = vmatpush.bf16.msra.mxu0 %v848
        %1097 = vmatpush.bf16.msra.mxu0 %v846
        %1098 = vmatmul.bf16.gmra.mxu0 %v260
        %v1099 = vpop.f32.mrf.mxu0
        %v1100 = vadd.f32 %v1087, %v1099
        %v1101 = vpop.f32.mrf.mxu0
        %1102 = vdwg.mxu0
        %1103 = vmatpush.bf16.msra.mxu0 %v876
        %1104 = vmatpush.bf16.msra.mxu0 %v874
        %1105 = vmatpush.bf16.msra.mxu0 %v872
        %1106 = vmatpush.bf16.msra.mxu0 %v870
        %1107 = vmatpush.bf16.msra.mxu0 %v868
        %1108 = vmatpush.bf16.msra.mxu0 %v866
        %1109 = vmatpush.bf16.msra.mxu0 %v864
        %1110 = vmatpush.bf16.msra.mxu0 %v862
        %1111 = vmatmul.bf16.gmra.mxu0 %v261
        %v1112 = vpop.f32.mrf.mxu0
        %v1113 = vadd.f32 %v1100, %v1112
        %v1114 = vpop.f32.mrf.mxu0
        %1115 = vdwg.mxu0
        %1116 = vmatpush.bf16.msra.mxu0 %v892
        %1117 = vmatpush.bf16.msra.mxu0 %v890
        %1118 = vmatpush.bf16.msra.mxu0 %v888
        %1119 = vmatpush.bf16.msra.mxu0 %v886
        %1120 = vmatpush.bf16.msra.mxu0 %v884
        %1121 = vmatpush.bf16.msra.mxu0 %v882
        %1122 = vmatpush.bf16.msra.mxu0 %v880
        %1123 = vmatpush.bf16.msra.mxu0 %v878
        %1124 = vmatmul.bf16.gmra.mxu0 %v262
        %v1125 = vpop.f32.mrf.mxu0
        %v1126 = vadd.f32 %v1113, %v1125
        %v1127 = vpop.f32.mrf.mxu0
        %1128 = vdwg.mxu0
        %1129 = vmatpush.bf16.msra.mxu0 %v908
        %1130 = vmatpush.bf16.msra.mxu0 %v906
        %1131 = vmatpush.bf16.msra.mxu0 %v904
        %1132 = vmatpush.bf16.msra.mxu0 %v902
        %1133 = vmatpush.bf16.msra.mxu0 %v900
        %1134 = vmatpush.bf16.msra.mxu0 %v898
        %1135 = vmatpush.bf16.msra.mxu0 %v896
        %1136 = vmatpush.bf16.msra.mxu0 %v894
        %1137 = vmatmul.bf16.gmra.mxu0 %v263
        %v1138 = vpop.f32.mrf.mxu0
        %v1139 = vadd.f32 %v1126, %v1138
        %v1140 = vpop.f32.mrf.mxu0
        %1141 = vdwg.mxu0
        %1142 = vmatpush.bf16.msra.mxu0 %v797
        %1143 = vmatpush.bf16.msra.mxu0 %v795
        %1144 = vmatpush.bf16.msra.mxu0 %v793
        %1145 = vmatpush.bf16.msra.mxu0 %v791
        %1146 = vmatpush.bf16.msra.mxu0 %v789
        %1147 = vmatpush.bf16.msra.mxu0 %v787
        %1148 = vmatpush.bf16.msra.mxu0 %v785
        %1149 = vmatpush.bf16.msra.mxu0 %v783
        %1150 = vmatmul.bf16.gmra.mxu0 %v256
        %v1151 = vpop.f32.mrf.mxu0
        %v1152 = vadd.f32 %v395, %v1151
        %v1153 = vpop.f32.mrf.mxu0
        %1154 = vdwg.mxu0
        %1155 = vmatpush.bf16.msra.mxu0 %v813
        %1156 = vmatpush.bf16.msra.mxu0 %v811
        %1157 = vmatpush.bf16.msra.mxu0 %v809
        %1158 = vmatpush.bf16.msra.mxu0 %v807
        %1159 = vmatpush.bf16.msra.mxu0 %v805
        %1160 = vmatpush.bf16.msra.mxu0 %v803
        %1161 = vmatpush.bf16.msra.mxu0 %v801
        %1162 = vmatpush.bf16.msra.mxu0 %v799
        %1163 = vmatmul.bf16.gmra.mxu0 %v257
        %v1164 = vpop.f32.mrf.mxu0
        %v1165 = vadd.f32 %v1152, %v1164
        %v1166 = vpop.f32.mrf.mxu0
        %1167 = vdwg.mxu0
        %1168 = vmatpush.bf16.msra.mxu0 %v829
        %1169 = vmatpush.bf16.msra.mxu0 %v827
        %1170 = vmatpush.bf16.msra.mxu0 %v825
        %1171 = vmatpush.bf16.msra.mxu0 %v823
        %1172 = vmatpush.bf16.msra.mxu0 %v821
        %1173 = vmatpush.bf16.msra.mxu0 %v819
        %1174 = vmatpush.bf16.msra.mxu0 %v817
        %1175 = vmatpush.bf16.msra.mxu0 %v815
        %1176 = vmatmul.bf16.gmra.mxu0 %v258
        %v1177 = vpop.f32.mrf.mxu0
        %v1178 = vadd.f32 %v1165, %v1177
        %v1179 = vpop.f32.mrf.mxu0
        %1180 = vdwg.mxu0
        %1181 = vmatpush.bf16.msra.mxu0 %v845
        %1182 = vmatpush.bf16.msra.mxu0 %v843
        %1183 = vmatpush.bf16.msra.mxu0 %v841
        %1184 = vmatpush.bf16.msra.mxu0 %v839
        %1185 = vmatpush.bf16.msra.mxu0 %v837
        %1186 = vmatpush.bf16.msra.mxu0 %v835
        %1187 = vmatpush.bf16.msra.mxu0 %v833
        %1188 = vmatpush.bf16.msra.mxu0 %v831
        %1189 = vmatmul.bf16.gmra.mxu0 %v259
        %v1190 = vpop.f32.mrf.mxu0
        %v1191 = vadd.f32 %v1178, %v1190
        %v1192 = vpop.f32.mrf.mxu0
        %1193 = vdwg.mxu0
        %1194 = vmatpush.bf16.msra.mxu0 %v861
        %1195 = vmatpush.bf16.msra.mxu0 %v859
        %1196 = vmatpush.bf16.msra.mxu0 %v857
        %1197 = vmatpush.bf16.msra.mxu0 %v855
        %1198 = vmatpush.bf16.msra.mxu0 %v853
        %1199 = vmatpush.bf16.msra.mxu0 %v851
        %1200 = vmatpush.bf16.msra.mxu0 %v849
        %1201 = vmatpush.bf16.msra.mxu0 %v847
        %1202 = vmatmul.bf16.gmra.mxu0 %v260
        %v1203 = vpop.f32.mrf.mxu0
        %v1204 = vadd.f32 %v1191, %v1203
        %v1205 = vpop.f32.mrf.mxu0
        %1206 = vdwg.mxu0
        %1207 = vmatpush.bf16.msra.mxu0 %v877
        %1208 = vmatpush.bf16.msra.mxu0 %v875
        %1209 = vmatpush.bf16.msra.mxu0 %v873
        %1210 = vmatpush.bf16.msra.mxu0 %v871
        %1211 = vmatpush.bf16.msra.mxu0 %v869
        %1212 = vmatpush.bf16.msra.mxu0 %v867
        %1213 = vmatpush.bf16.msra.mxu0 %v865
        %1214 = vmatpush.bf16.msra.mxu0 %v863
        %1215 = vmatmul.bf16.gmra.mxu0 %v261
        %v1216 = vpop.f32.mrf.mxu0
        %v1217 = vadd.f32 %v1204, %v1216
        %v1218 = vpop.f32.mrf.mxu0
        %1219 = vdwg.mxu0
        %1220 = vmatpush.bf16.msra.mxu0 %v893
        %1221 = vmatpush.bf16.msra.mxu0 %v891
        %1222 = vmatpush.bf16.msra.mxu0 %v889
        %1223 = vmatpush.bf16.msra.mxu0 %v887
        %1224 = vmatpush.bf16.msra.mxu0 %v885
        %1225 = vmatpush.bf16.msra.mxu0 %v883
        %1226 = vmatpush.bf16.msra.mxu0 %v881
        %1227 = vmatpush.bf16.msra.mxu0 %v879
        %1228 = vmatmul.bf16.gmra.mxu0 %v262
        %v1229 = vpop.f32.mrf.mxu0
        %v1230 = vadd.f32 %v1217, %v1229
        %v1231 = vpop.f32.mrf.mxu0
        %1232 = vdwg.mxu0
        %1233 = vmatpush.bf16.msra.mxu0 %v909
        %1234 = vmatpush.bf16.msra.mxu0 %v907
        %1235 = vmatpush.bf16.msra.mxu0 %v905
        %1236 = vmatpush.bf16.msra.mxu0 %v903
        %1237 = vmatpush.bf16.msra.mxu0 %v901
        %1238 = vmatpush.bf16.msra.mxu0 %v899
        %1239 = vmatpush.bf16.msra.mxu0 %v897
        %1240 = vmatpush.bf16.msra.mxu0 %v895
        %1241 = vmatmul.bf16.gmra.mxu0 %v263
        %v1242 = vpop.f32.mrf.mxu0
        %v1243 = vadd.f32 %v1230, %v1242
        %v1244 = vpop.f32.mrf.mxu0
        %1245 = vdwg.mxu0
        %v1248 = vrot.slane %v1243, 6
        %vm1249 = vcmask 1041408
        %v1250 = vsel %vm1249, %v1139, %v1248
        %1252 = vst [vmem:[%s229] sm:$0xf] %v1250
        %s1253 = sand.u32 %s104, 1
        %s1254 = scalar_lea.sflag [#allocation4], %s1253
        %s1255 = sand.u32 %s104, 1
        %s1256 = smul.addr %s1255, 4
        %s1257 = scalar_lea.vmem [#allocation7], %s1256
        // Predicated region
        $region41: #{linear_classifier_forward.1} parent=31 // pred_check
          %p1258 = pneg %p114
        $region42: #{linear_classifier_forward.1} parent=31 // pred_check_branch
          %1260 = sbr.rel (%p1258) target = $region44
        $region43: #{linear_classifier_forward.1} parent=31 // pred_region
          %s1261 = smul.u32 2, %s23
          %1263 = vsyncadd %s1254, 0
          %s1264 = smul.addr %s1261, 2
          %s1265 = scalar_lea.hbm %s3, %s1264
          %s1267 = sshll.u32 %s1257, 4
          %s1268 = int_to_ptr.vmem [resolvable:$true] %s1267
          %s1269 = sshll.u32 %s1265, 4
          %s1270 = int_to_ptr.hbm [resolvable:$true] %s1269
          %1272 = dma.vmem_to_hbm [thread:$0]  %s1268, 64, %s1270, %s1254
        $region44: #{linear_classifier_forward.1} parent=31 // pred_fallthru
          _
      $region32: #{linear_classifier_forward.1} parent=5 // pred_fallthru
        _
      %p1273 = scmp.le.s32.totalorder 2, %s18
      // Predicated region
      $region45: #{linear_classifier_forward.1} parent=5 // pred_check
        %p1274 = pneg %p1273
      $region46: #{linear_classifier_forward.1} parent=5 // pred_check_branch
        %1276 = sbr.rel (%p1274) target = $region48
      $region47: #{linear_classifier_forward.1} parent=5 // pred_region
        %s1277 = ssub.s32 %s18, 2
        // Predicated region
        $region49: #{linear_classifier_forward.1} parent=47 // pred_check
          %p1278 = pneg %p120
        $region50: #{linear_classifier_forward.1} parent=47 // pred_check_branch
          %1280 = sbr.rel (%p1278) target = $region52
        $region51: #{linear_classifier_forward.1} parent=47 // pred_region
          %s1281 = sand.u32 %s105, 1
          %s1282 = scalar_lea.sflag [#allocation4], %s1281
          %s1283 = sand.u32 %s105, 1
          %s1284 = smul.addr %s1283, 4
          %s1285 = scalar_lea.vmem [#allocation7], %s1284
          %1287 = dma.done %s1282, 64
        $region52: #{linear_classifier_forward.1} parent=47 // pred_fallthru
          _
      $region48: #{linear_classifier_forward.1} parent=5 // pred_fallthru
        _
    $region6: #{linear_classifier_forward.1} parent=1 // loop_footer
      %s22 = sadd.s32 1, %s18
    $region7: #{linear_classifier_forward.1} parent=1 // loop_footer_branch
      %17 = sbr.rel target = $region3
    $region8: #{linear_classifier_forward.1} parent=1 // loop_exit
      _
    %1288 = vsyncpa [#allocation3], 1
    %s1289 = scalar_lea.sflag [#allocation3], 1
    %1290 = vsyncpa %s1289, 1
    %1291 = vsyncpa [#allocation6], 1
    %s1292 = scalar_lea.sflag [#allocation6], 1
    %1293 = vsyncpa %s1292, 1
    %1294 = vsyncpa [#allocation4], 1
    %s1295 = scalar_lea.sflag [#allocation4], 1
    %1296 = vsyncpa %s1295, 1

</llo_original>
